<compile_context>
chip_gen: v7x
topology: tpu7x:2x2x1
jax: 0.10.0
libtpu: 0.0.40
codegen_flags: <defaults>
</compile_context>

<pallas_src>
import functools

import jax
import jax.numpy as jnp
from jax import lax
from jax.experimental import pallas as pl
from jax.experimental.pallas import tpu as pltpu


# --------------------------------------------------------------------------- #
# Kernels
# --------------------------------------------------------------------------- #
def _fused_kernel(x_ref, p_ref, o_ref, *, eps, inv_hw, inv_hw1, inv_chw,
                  inv_chw1, hw_f):
    """Single-pass-over-HBM fused norm: stats + per-(b,c) affine apply."""
    x = x_ref[...].astype(jnp.float32)                     # (bt, C, HW)
    p = p_ref[...].astype(jnp.float32)                     # (1, C, 4)
    gamma = p[:, :, 0:1]
    beta = p[:, :, 1:2]
    rho = p[:, :, 2:3]                                     # already clipped
    omr = p[:, :, 3:4]                                     # 1 - rho

    # Per-channel mean, layer mean from the tiny channel sums.
    s = jnp.sum(x, axis=2, keepdims=True)                  # (bt, C, 1)
    ins_mean = s * inv_hw
    ln_mean = jnp.sum(s, axis=1, keepdims=True) * inv_chw  # (bt, 1, 1)

    # Centered per-channel sum of squares (numerically robust; extra pass is
    # VMEM-only, the kernel stays HBM-bound).
    d = x - ins_mean
    ssq_c = jnp.sum(d * d, axis=2, keepdims=True)          # (bt, C, 1)
    ins_var = ssq_c * inv_hw1
    inv_ins = lax.rsqrt(ins_var + eps)

    # Layer SSQ via parallel-axis shift: sum_c [ ssq_c + HW * (mu_c - mu_L)^2 ]
    dm = ins_mean - ln_mean
    ssq_l = jnp.sum(ssq_c + hw_f * dm * dm, axis=1, keepdims=True)
    ln_var = ssq_l * inv_chw1
    inv_ln = lax.rsqrt(ln_var + eps)

    # Fold everything into out = x * a + b.
    w = rho * inv_ins + omr * inv_ln                       # (bt, C, 1)
    a = gamma * w
    b = beta - gamma * (rho * ins_mean * inv_ins + omr * ln_mean * inv_ln)
    o_ref[...] = (x * a + b).astype(o_ref.dtype)


def _stats_kernel(x_ref, s_ref, ss_ref):
    """Accumulate per-channel sum / sum-of-squares across HW chunks."""
    j = pl.program_id(1)

    @pl.when(j == 0)
    def _():
        s_ref[...] = jnp.zeros_like(s_ref)
        ss_ref[...] = jnp.zeros_like(ss_ref)

    x = x_ref[...].astype(jnp.float32)                     # (1, C, hw_chunk)
    s_ref[...] += jnp.sum(x, axis=2, keepdims=True)
    ss_ref[...] += jnp.sum(x * x, axis=2, keepdims=True)


def _apply_kernel(x_ref, a_ref, b_ref, o_ref):
    """Elementwise out = x * a + b with per-(batch, channel) a/b columns."""
    x = x_ref[...].astype(jnp.float32)
    o_ref[...] = (x * a_ref[...] + b_ref[...]).astype(o_ref.dtype)


# --------------------------------------------------------------------------- #
# Host-side sizing helpers
# --------------------------------------------------------------------------- #
def _vmem_limit_bytes():
    """Scoped VMEM limit derived from the chip's physical VMEM capacity."""
    try:
        cap = int(pltpu.get_tpu_info().vmem_capacity_bytes)
    except Exception:
        cap = 64 * 1024 * 1024  # conservative (v7x physical VMEM)
    # 3/4 of physical: 96 MiB on v5e/v6e (128 MiB), 48 MiB on v7x (64 MiB).
    return min(cap * 3 // 4, 100 * 1024 * 1024)


def _pick_hw_chunk(hw, c, itemsize, block_budget):
    """Largest lane-aligned divisor of HW whose (1, C, chunk) block fits."""
    best_fit, smallest = None, None
    for cand in range(128, hw + 1, 128):
        if hw % cand == 0:
            if smallest is None:
                smallest = cand
            if c * cand * itemsize <= block_budget:
                best_fit = cand
    if best_fit is not None:
        return best_fit
    if smallest is not None:
        return smallest
    return hw  # HW < 128 or not lane-aligned; take the full extent.


# --------------------------------------------------------------------------- #
# Paths
# --------------------------------------------------------------------------- #
def _fused_path(x3, gamma, beta, rho, eps, block_budget, vmem_limit):
    b, c, hw = x3.shape
    itemsize = jnp.dtype(x3.dtype).itemsize
    per_batch_bytes = c * hw * itemsize

    bt = max(1, min(b, block_budget // per_batch_bytes))
    if b >= 2:
        # Keep >= 2 "parallel" grid steps so both v7x TensorCores get work
        # (no effect on single-TC v5e/v6e).
        bt = min(bt, max(1, b // 2))
    while b % bt:
        bt -= 1

    rho_c = jnp.clip(rho.reshape(1, c, 1).astype(jnp.float32), 0.0, 1.0)
    params = jnp.concatenate(
        [gamma.reshape(1, c, 1).astype(jnp.float32),
         beta.reshape(1, c, 1).astype(jnp.float32),
         rho_c,
         1.0 - rho_c],
        axis=2)                                            # (1, C, 4) -> 1 DMA

    kernel = functools.partial(
        _fused_kernel,
        eps=float(eps),
        inv_hw=1.0 / hw,
        inv_hw1=1.0 / max(hw - 1, 1),
        inv_chw=1.0 / (c * hw),
        inv_chw1=1.0 / max(c * hw - 1, 1),
        hw_f=float(hw))

    return pl.pallas_call(
        kernel,
        out_shape=jax.ShapeDtypeStruct((b, c, hw), x3.dtype),
        grid_spec=pltpu.PrefetchScalarGridSpec(
            num_scalar_prefetch=0,
            grid=(b // bt,),
            in_specs=[
                pl.BlockSpec((bt, c, hw), lambda i: (i, 0, 0)),
                pl.BlockSpec((1, c, 4), lambda i: (0, 0, 0)),
            ],
            out_specs=pl.BlockSpec((bt, c, hw), lambda i: (i, 0, 0)),
        ),
        compiler_params=pltpu.CompilerParams(
            dimension_semantics=("parallel",),
            vmem_limit_bytes=vmem_limit,
        ),
    )(x3, params)


def _chunked_path(x3, gamma, beta, rho, eps, block_budget, vmem_limit):
    """Two-phase path for feature maps too large for a single VMEM block."""
    b, c, hw = x3.shape
    itemsize = jnp.dtype(x3.dtype).itemsize
    hw_chunk = _pick_hw_chunk(hw, c, itemsize, block_budget)
    n_chunks = hw // hw_chunk

    # Phase 1: per-channel sum / sum-of-squares accumulated over HW chunks.
    s, ss = pl.pallas_call(
        _stats_kernel,
        out_shape=(jax.ShapeDtypeStruct((b, c, 1), jnp.float32),
                   jax.ShapeDtypeStruct((b, c, 1), jnp.float32)),
        grid_spec=pltpu.PrefetchScalarGridSpec(
            num_scalar_prefetch=0,
            grid=(b, n_chunks),
            in_specs=[pl.BlockSpec((1, c, hw_chunk), lambda i, j: (i, 0, j))],
            out_specs=(pl.BlockSpec((1, c, 1), lambda i, j: (i, 0, 0)),
                       pl.BlockSpec((1, c, 1), lambda i, j: (i, 0, 0))),
        ),
        compiler_params=pltpu.CompilerParams(
            dimension_semantics=("parallel", "arbitrary"),
            vmem_limit_bytes=vmem_limit,
        ),
    )(x3)

    # Tiny (B, C) stats math in plain JAX -> per-(b, c) affine coefficients.
    # TODO(synk): E[x^2]-mean^2 here can cancel catastrophically when
    # |mean| >> std at very large HW; switch to a shifted accumulation if the
    # surrounding model produces strongly offset activations.
    s2 = s[..., 0]
    ss2 = ss[..., 0]
    ins_mean = s2 * (1.0 / hw)
    ins_var = (ss2 - s2 * ins_mean) * (1.0 / max(hw - 1, 1))
    inv_ins = lax.rsqrt(ins_var + eps)
    S = jnp.sum(s2, axis=1, keepdims=True)
    SS = jnp.sum(ss2, axis=1, keepdims=True)
    ln_mean = S * (1.0 / (c * hw))
    ln_var = (SS - S * ln_mean) * (1.0 / max(c * hw - 1, 1))
    inv_ln = lax.rsqrt(ln_var + eps)

    g2 = gamma.reshape(1, c).astype(jnp.float32)
    be2 = beta.reshape(1, c).astype(jnp.float32)
    rho_c = jnp.clip(rho.reshape(1, c).astype(jnp.float32), 0.0, 1.0)
    w = rho_c * inv_ins + (1.0 - rho_c) * inv_ln
    a = (g2 * w).reshape(b, c, 1)
    bb = (be2 - g2 * (rho_c * ins_mean * inv_ins
                      + (1.0 - rho_c) * ln_mean * inv_ln)).reshape(b, c, 1)

    # Phase 2: apply out = x * a + b chunk-by-chunk.
    return pl.pallas_call(
        _apply_kernel,
        out_shape=jax.ShapeDtypeStruct((b, c, hw), x3.dtype),
        grid_spec=pltpu.PrefetchScalarGridSpec(
            num_scalar_prefetch=0,
            grid=(b, n_chunks),
            in_specs=[
                pl.BlockSpec((1, c, hw_chunk), lambda i, j: (i, 0, j)),
                pl.BlockSpec((1, c, 1), lambda i, j: (i, 0, 0)),
                pl.BlockSpec((1, c, 1), lambda i, j: (i, 0, 0)),
            ],
            out_specs=pl.BlockSpec((1, c, hw_chunk), lambda i, j: (i, 0, j)),
        ),
        compiler_params=pltpu.CompilerParams(
            dimension_semantics=("parallel", "parallel"),
            vmem_limit_bytes=vmem_limit,
        ),
    )(x3, a, bb)


# --------------------------------------------------------------------------- #
# Public entry point
# --------------------------------------------------------------------------- #
def layer_instance_norm(x, gamma, beta, rho, eps=1e-6, *,
                        block_budget_bytes=None):
    """x: (B, C, H, W); gamma/beta/rho: (1, C, 1, 1). Returns (B, C, H, W).

    eps = 1e-6 matches the PyTorch module's self.eps.
    """
    b, c, h, w = x.shape
    hw = h * w
    x3 = x.reshape(b, c, hw)

    vmem_limit = _vmem_limit_bytes()
    if block_budget_bytes is None:
        # Double-buffered input + double-buffered output (4 blocks) + ~20%
        # headroom for params/scratch.
        block_budget_bytes = vmem_limit // 5

    itemsize = jnp.dtype(x.dtype).itemsize
    per_batch_bytes = c * hw * itemsize

    if per_batch_bytes <= block_budget_bytes:
        out = _fused_path(x3, gamma, beta, rho, eps, block_budget_bytes,
                          vmem_limit)
    else:
        out = _chunked_path(x3, gamma, beta, rho, eps, block_budget_bytes,
                            vmem_limit)
    return out.reshape(b, c, h, w)


# --------------------------------------------------------------------------- #
# Reference + test
# --------------------------------------------------------------------------- #
def _reference(x, gamma, beta, rho, eps=1e-6):
    b, c, h, w = x.shape
    xr = x.reshape(b, c, -1).astype(jnp.float32)
    ins_mean = xr.mean(axis=2).reshape(b, c, 1, 1)
    ins_var = xr.var(axis=2, ddof=1).reshape(b, c, 1, 1) + eps
    ins_std = jnp.sqrt(ins_var)
    xf = x.reshape(b, -1).astype(jnp.float32)
    ln_mean = xf.mean(axis=1).reshape(b, 1, 1, 1)
    ln_var = xf.var(axis=1, ddof=1).reshape(b, 1, 1, 1) + eps
    ln_std = jnp.sqrt(ln_var)
    rho_c = jnp.clip(rho, 0.0, 1.0)
    x_ins = (x - ins_mean) / ins_std
    x_ln = (x - ln_mean) / ln_std
    x_hat = rho_c * x_ins + (1 - rho_c) * x_ln
    return x_hat * gamma + beta


if __name__ == "__main__":
    key = jax.random.PRNGKey(0)
    B, C, H, W = 2, 4, 16, 16

    x = jax.random.normal(key, (B, C, H, W), dtype=jnp.float32)

    # Parameter init matching the module (gamma=1, beta=0, rho=0); rho
    # perturbed so the instance/layer blend is actually exercised.
    gamma = jnp.ones((1, C, 1, 1), dtype=jnp.float32)
    beta = jnp.zeros((1, C, 1, 1), dtype=jnp.float32)
    rho = jnp.full((1, C, 1, 1), 0.3, dtype=jnp.float32)

    ref = _reference(x, gamma, beta, rho)

    # Path 1: fused single-pass kernel (default sizing).
    out = layer_instance_norm(x, gamma, beta, rho)
    out = jax.block_until_ready(out)
    assert out.shape == (B, C, H, W)
    assert jnp.allclose(out, ref, rtol=1e-5, atol=1e-5), "fused path mismatch"

    # Path 2: HW-chunked two-phase kernels (force by shrinking the budget so
    # the large-feature-map path is also compiled and verified).
    out2 = layer_instance_norm(x, gamma, beta, rho,
                               block_budget_bytes=C * 128 * 4)
    out2 = jax.block_until_ready(out2)
    assert jnp.allclose(out2, ref, rtol=1e-5, atol=1e-5), "chunked path mismatch"

    print("KERNEL_OK")
</pallas_src>

<mosaic_0001>
module attributes {stable_mosaic.version = 11 : i64} {
  func.func @_fused_kernel(%arg0: i32, %arg1: memref<1x4x256xf32, #tpu.memory_space<vmem>>, %arg2: memref<1x4x4xf32, #tpu.memory_space<vmem>>, %arg3: memref<1x4x256xf32, #tpu.memory_space<vmem>>) attributes {dimension_semantics = [#tpu.dimension_semantics<parallel>], iteration_bounds = array<i64: 2>, scalar_prefetch = 0 : i64, scratch_operands = 0 : i64, tpu.core_type = #tpu.core_type<tc>, window_params = [{transform_indices = @transform_0, window_bounds = array<i64: 1, 4, 256>}, {pipeline_mode = #tpu.pipeline_mode<synchronous>, transform_indices = @transform_1, window_bounds = array<i64: 1, 4, 4>}, {transform_indices = @transform_2, window_bounds = array<i64: 1, 4, 256>}]} {
    %c0 = arith.constant 0 : index
    %c0_0 = arith.constant 0 : index
    %c0_1 = arith.constant 0 : index
    %0 = vector.load %arg1[%c0, %c0_0, %c0_1] : memref<1x4x256xf32, #tpu.memory_space<vmem>>, vector<1x4x256xf32>
    %c0_2 = arith.constant 0 : index
    %c0_3 = arith.constant 0 : index
    %c0_4 = arith.constant 0 : index
    %1 = vector.load %arg2[%c0_2, %c0_3, %c0_4] : memref<1x4x4xf32, #tpu.memory_space<vmem>>, vector<1x4x4xf32>
    %2 = vector.extract_strided_slice %1 {offsets = [0, 0, 0], sizes = [1, 4, 1], strides = [1, 1, 1]} : vector<1x4x4xf32> to vector<1x4x1xf32>
    %3 = vector.extract_strided_slice %1 {offsets = [0, 0, 1], sizes = [1, 4, 1], strides = [1, 1, 1]} : vector<1x4x4xf32> to vector<1x4x1xf32>
    %4 = vector.extract_strided_slice %1 {offsets = [0, 0, 2], sizes = [1, 4, 1], strides = [1, 1, 1]} : vector<1x4x4xf32> to vector<1x4x1xf32>
    %5 = vector.extract_strided_slice %1 {offsets = [0, 0, 3], sizes = [1, 4, 1], strides = [1, 1, 1]} : vector<1x4x4xf32> to vector<1x4x1xf32>
    %cst = arith.constant dense<0.000000e+00> : vector<1x4xf32>
    %6 = vector.multi_reduction <add>, %0, %cst [2] : vector<1x4x256xf32> to vector<1x4xf32>
    %7 = vector.shape_cast %6 : vector<1x4xf32> to vector<1x4x1xf32>
    %cst_5 = arith.constant 3.906250e-03 : f32
    %8 = vector.broadcast %cst_5 : f32 to vector<1x4x1xf32>
    %9 = arith.mulf %7, %8 : vector<1x4x1xf32>
    %cst_6 = arith.constant dense<0.000000e+00> : vector<1x1xf32>
    %10 = vector.multi_reduction <add>, %7, %cst_6 [1] : vector<1x4x1xf32> to vector<1x1xf32>
    %11 = vector.shape_cast %10 : vector<1x1xf32> to vector<1x1x1xf32>
    %cst_7 = arith.constant 9.765625E-4 : f32
    %12 = vector.broadcast %cst_7 : f32 to vector<1x1x1xf32>
    %13 = arith.mulf %11, %12 : vector<1x1x1xf32>
    %14 = vector.broadcast %9 : vector<1x4x1xf32> to vector<1x4x256xf32>
    %15 = arith.subf %0, %14 : vector<1x4x256xf32>
    %16 = arith.mulf %15, %15 : vector<1x4x256xf32>
    %cst_8 = arith.constant dense<0.000000e+00> : vector<1x4xf32>
    %17 = vector.multi_reduction <add>, %16, %cst_8 [2] : vector<1x4x256xf32> to vector<1x4xf32>
    %18 = vector.shape_cast %17 : vector<1x4xf32> to vector<1x4x1xf32>
    %cst_9 = arith.constant 0.00392156886 : f32
    %19 = vector.broadcast %cst_9 : f32 to vector<1x4x1xf32>
    %20 = arith.mulf %18, %19 : vector<1x4x1xf32>
    %cst_10 = arith.constant 9.99999997E-7 : f32
    %21 = vector.broadcast %cst_10 : f32 to vector<1x4x1xf32>
    %22 = arith.addf %20, %21 : vector<1x4x1xf32>
    %23 = math.rsqrt %22 : vector<1x4x1xf32>
    %24 = vector.broadcast %13 : vector<1x1x1xf32> to vector<1x4x1xf32>
    %25 = arith.subf %9, %24 : vector<1x4x1xf32>
    %cst_11 = arith.constant 2.560000e+02 : f32
    %26 = vector.broadcast %cst_11 : f32 to vector<1x4x1xf32>
    %27 = arith.mulf %26, %25 : vector<1x4x1xf32>
    %28 = arith.mulf %27, %25 : vector<1x4x1xf32>
    %29 = arith.addf %18, %28 : vector<1x4x1xf32>
    %cst_12 = arith.constant dense<0.000000e+00> : vector<1x1xf32>
    %30 = vector.multi_reduction <add>, %29, %cst_12 [1] : vector<1x4x1xf32> to vector<1x1xf32>
    %31 = vector.shape_cast %30 : vector<1x1xf32> to vector<1x1x1xf32>
    %cst_13 = arith.constant 9.77517105E-4 : f32
    %32 = vector.broadcast %cst_13 : f32 to vector<1x1x1xf32>
    %33 = arith.mulf %31, %32 : vector<1x1x1xf32>
    %cst_14 = arith.constant 9.99999997E-7 : f32
    %34 = vector.broadcast %cst_14 : f32 to vector<1x1x1xf32>
    %35 = arith.addf %33, %34 : vector<1x1x1xf32>
    %36 = math.rsqrt %35 : vector<1x1x1xf32>
    %37 = arith.mulf %4, %23 : vector<1x4x1xf32>
    %38 = vector.broadcast %36 : vector<1x1x1xf32> to vector<1x4x1xf32>
    %39 = arith.mulf %5, %38 : vector<1x4x1xf32>
    %40 = arith.addf %37, %39 : vector<1x4x1xf32>
    %41 = arith.mulf %2, %40 : vector<1x4x1xf32>
    %42 = arith.mulf %4, %9 : vector<1x4x1xf32>
    %43 = arith.mulf %42, %23 : vector<1x4x1xf32>
    %44 = vector.broadcast %13 : vector<1x1x1xf32> to vector<1x4x1xf32>
    %45 = arith.mulf %5, %44 : vector<1x4x1xf32>
    %46 = vector.broadcast %36 : vector<1x1x1xf32> to vector<1x4x1xf32>
    %47 = arith.mulf %45, %46 : vector<1x4x1xf32>
    %48 = arith.addf %43, %47 : vector<1x4x1xf32>
    %49 = arith.mulf %2, %48 : vector<1x4x1xf32>
    %50 = arith.subf %3, %49 : vector<1x4x1xf32>
    %51 = vector.broadcast %41 : vector<1x4x1xf32> to vector<1x4x256xf32>
    %52 = arith.mulf %0, %51 : vector<1x4x256xf32>
    %53 = vector.broadcast %50 : vector<1x4x1xf32> to vector<1x4x256xf32>
    %54 = arith.addf %52, %53 : vector<1x4x256xf32>
    %c0_15 = arith.constant 0 : index
    %c0_16 = arith.constant 0 : index
    %c0_17 = arith.constant 0 : index
    %55 = vector.load %arg3[%c0_15, %c0_16, %c0_17] : memref<1x4x256xf32, #tpu.memory_space<vmem>>, vector<1x4x256xf32>
    tpu.vector_store %arg3[%c0_15, %c0_16, %c0_17], %54 {strides = array<i32>} : memref<1x4x256xf32, #tpu.memory_space<vmem>>, vector<1x4x256xf32>,
    return
  }
  func.func @transform_0(%arg0: i32) -> (i32, i32, i32) {
    %c0_i32 = arith.constant 0 : i32
    %c0_i32_0 = arith.constant 0 : i32
    %c0_i32_1 = arith.constant 0 : i32
    return %arg0, %c0_i32, %c0_i32_0 : i32, i32, i32
  }
  func.func @transform_1(%arg0: i32) -> (i32, i32, i32) {
    %c0_i32 = arith.constant 0 : i32
    %c0_i32_0 = arith.constant 0 : i32
    %c0_i32_1 = arith.constant 0 : i32
    %c0_i32_2 = arith.constant 0 : i32
    return %c0_i32, %c0_i32_0, %c0_i32_1 : i32, i32, i32
  }
  func.func @transform_2(%arg0: i32) -> (i32, i32, i32) {
    %c0_i32 = arith.constant 0 : i32
    %c0_i32_0 = arith.constant 0 : i32
    %c0_i32_1 = arith.constant 0 : i32
    return %arg0, %c0_i32, %c0_i32_0 : i32, i32, i32
  }
}

</mosaic_0001>

<llo_original>
// kernel: tpu_custom_call.1
$region0: #{tpu_custom_call.1}
  #allocation0 [shape = 'u32[]', space=smem, size = 0x4, offset = 0x4, fixed_abs, tag = 'smem constant byte address 0x4 - core index']
  #allocation1 [shape = 'u32[144,128]{1,0:T(1,128)}', space=vmem, size = 0x12000, scoped, tag = 'internal scratch']
  %s0 = inlined_call_operand.hbm [shape: f32[2,4,256], index: 0, kind: input, shape index: {}]
  %s1 = inlined_call_operand.hbm [shape: f32[1,4,4], index: 1, kind: input, shape index: {}]
  %s2 = inlined_call_operand.hbm [shape: f32[2,4,256], index: 2, kind: output, shape index: {}]
  %s3 = sld [smem:[#allocation0]]
  $region49: #{tpu_custom_call.1} parent=0
    _
  %s5 = ssub.s32 1, %s3
  %s6 = scalar_select 0, %s5, %s3
  $region1: #{tpu_custom_call.1} parent=0
    #allocation2 [shape = 'u8[8192]{0}', space=vmem, size = 0x2000, scoped, tag = 'input window, operand 0']
    #allocation3 [shape = 's32[2]{0}', space=sflag, size = 0x8, scoped, tag = 'scoped memory for tpu_custom_call.1']
    #allocation4 [shape = 's32[2]{0}', space=sflag, size = 0x8, scoped, tag = 'scoped memory for tpu_custom_call.1']
    #allocation5 [shape = 'u8[2048]{0}', space=vmem, size = 0x800, scoped, tag = 'input window, operand 1, single buffered']
    #allocation6 [shape = 's32[1]{0}', space=sflag, size = 0x4, scoped, tag = 'scoped memory for tpu_custom_call.1']
    #allocation7 [shape = 'u8[8192]{0}', space=vmem, size = 0x2000, scoped, tag = 'output window, operand 0']
    %7 = vsyncpa [#allocation3], 0
    %s8 = scalar_lea.sflag [#allocation3], 1
    %9 = vsyncpa %s8, 0
    %10 = vsyncpa [#allocation6], 0
    %11 = vsyncpa [#allocation4], 0
    %s12 = scalar_lea.sflag [#allocation4], 1
    %13 = vsyncpa %s12, 0
    loop: start=0, step=1, limit=4
    $region2: #{tpu_custom_call.1} parent=1 // loop_pre_header
      _
    $region3: #{tpu_custom_call.1} parent=1 // loop_header
      %s15 = sphi 0, %s19
      %p16 = scmp.ge.s32.totalorder %s15, 4
      %s25 = sphi 0, %s27
      %s28 = sphi 0, %s25
      %s29 = sphi 0, %s28
      %s45 = sphi 0, %s29
      %s49 = sphi 0, %s49
      %s51 = sphi 0, %s49
      %s52 = sphi 0, %s51
      %s66 = sphi 0, %s52
      %s72 = sphi 0, %s74
      %s75 = sphi 0, %s72
      %s76 = sphi 0, %s75
      %s92 = sphi 0, %s76
    $region4: #{tpu_custom_call.1} parent=1 // loop_header_branch
      %18 = sbr.rel (%p16) target = $region8
    $region5: #{tpu_custom_call.1} parent=1 // loop_body
      %s20 = ssub.s32 %s15, 1
      %s21 = ssub.s32 %s15, 2
      %s22 = sadd.s32 %s15, 1
      %s23 = ssub.s32 %s15, %s22
      %p24 = scmp.eq.s32.totalorder %s23, 0
      %s26 = sadd.s32 %s25, 1
      %s27 = scalar_select %p24, %s25, %s26
      %p30 = pneg %p24
      %p31 = scmp.eq.s32.totalorder %s15, 1
      %p32 = por %p30, %p31
      %p33 = scmp.ne.s32.totalorder %s25, %s28
      %p34 = scmp.eq.s32.totalorder %s15, 0
      %p35 = por %p33, %p34
      %p36 = scmp.ne.s32.totalorder %s25, %s28
      %p37 = scmp.eq.s32.totalorder %s20, 1
      %p38 = por %p36, %p37
      %p39 = scmp.ne.s32.totalorder %s28, %s29
      %p40 = scmp.eq.s32.totalorder %s20, 0
      %p41 = por %p39, %p40
      %p42 = scmp.ne.s32.totalorder %s28, %s29
      %p43 = scmp.eq.s32.totalorder %s21, 1
      %p44 = por %p42, %p43
      %p46 = scmp.ne.s32.totalorder %s29, %s45
      %p47 = scmp.eq.s32.totalorder %s21, 0
      %p48 = por %p46, %p47
      %s50 = sadd.s32 %s49, 1
      %p53 = scmp.eq.s32.totalorder %s15, 1
      %p54 = scmp.ne.s32.totalorder %s49, %s51
      %p55 = scmp.eq.s32.totalorder %s15, 0
      %p56 = por %p54, %p55
      %p57 = scmp.ne.s32.totalorder %s49, %s51
      %p58 = scmp.eq.s32.totalorder %s20, 1
      %p59 = por %p57, %p58
      %p60 = scmp.ne.s32.totalorder %s51, %s52
      %p61 = scmp.eq.s32.totalorder %s20, 0
      %p62 = por %p60, %p61
      %p63 = scmp.ne.s32.totalorder %s51, %s52
      %p64 = scmp.eq.s32.totalorder %s21, 1
      %p65 = por %p63, %p64
      %p67 = scmp.ne.s32.totalorder %s52, %s66
      %p68 = scmp.eq.s32.totalorder %s21, 0
      %p69 = por %p67, %p68
      %s70 = ssub.s32 %s15, %s22
      %p71 = scmp.eq.s32.totalorder %s70, 0
      %s73 = sadd.s32 %s72, 1
      %s74 = scalar_select %p71, %s72, %s73
      %p77 = pneg %p71
      %p78 = scmp.eq.s32.totalorder %s15, 1
      %p79 = por %p77, %p78
      %p80 = scmp.ne.s32.totalorder %s72, %s75
      %p81 = scmp.eq.s32.totalorder %s15, 0
      %p82 = por %p80, %p81
      %p83 = scmp.ne.s32.totalorder %s72, %s75
      %p84 = scmp.eq.s32.totalorder %s20, 1
      %p85 = por %p83, %p84
      %p86 = scmp.ne.s32.totalorder %s75, %s76
      %p87 = scmp.eq.s32.totalorder %s20, 0
      %p88 = por %p86, %p87
      %p89 = scmp.ne.s32.totalorder %s75, %s76
      %p90 = scmp.eq.s32.totalorder %s21, 1
      %p91 = por %p89, %p90
      %p93 = scmp.ne.s32.totalorder %s76, %s92
      %p94 = scmp.eq.s32.totalorder %s21, 0
      %p95 = por %p93, %p94
      %p96 = scmp.le.s32.totalorder 1, %s15
      %p97 = scmp.lt.s32.totalorder %s15, 3
      %p98 = pnand %p96, %p97
      %p99 = pneg %p98
      // Predicated region
      $region9: #{tpu_custom_call.1} parent=5 // pred_check
        _
      $region10: #{tpu_custom_call.1} parent=5 // pred_check_branch
        %101 = sbr.rel (%p98) target = $region12
      $region11: #{tpu_custom_call.1} parent=5 // pred_region
        %s102 = ssub.s32 %s15, 1
        // Predicated region
        $region13: #{tpu_custom_call.1} parent=11 // pred_check
          %p103 = pneg %p62
        $region14: #{tpu_custom_call.1} parent=11 // pred_check_branch
          %105 = sbr.rel (%p103) target = $region16
        $region15: #{tpu_custom_call.1} parent=11 // pred_region
          %s107 = ssub.s32 64, 64
          %108 = vsyncadd [#allocation6], %s107
          %s110 = sshll.u32 [#allocation5], 4
          %s111 = int_to_ptr.vmem [resolvable:$true] %s110
          %113 = dma.hbm_to_vmem [thread:$0]  %s1, 64, %s111, [#allocation6]
        $region16: #{tpu_custom_call.1} parent=11 // pred_fallthru
          _
      $region12: #{tpu_custom_call.1} parent=5 // pred_fallthru
        _
      %p114 = scmp.lt.s32.totalorder %s15, 2
      // Predicated region
      $region17: #{tpu_custom_call.1} parent=5 // pred_check
        %p115 = pneg %p114
      $region18: #{tpu_custom_call.1} parent=5 // pred_check_branch
        %117 = sbr.rel (%p115) target = $region20
      $region19: #{tpu_custom_call.1} parent=5 // pred_region
        // Predicated region
        $region21: #{tpu_custom_call.1} parent=19 // pred_check
          %p118 = pneg %p35
        $region22: #{tpu_custom_call.1} parent=19 // pred_check_branch
          %120 = sbr.rel (%p118) target = $region24
        $region23: #{tpu_custom_call.1} parent=19 // pred_region
          %s121 = sand.u32 %s25, 1
          %s122 = scalar_lea.sflag [#allocation3], %s121
          %s123 = sand.u32 %s25, 1
          %s124 = smul.addr %s123, 8
          %s125 = scalar_lea.vmem [#allocation2], %s124
          %s127 = ssub.s32 128, 128
          %128 = vsyncadd %s122, %s127
          %s129 = smul.addr %s15, 2
          %s130 = smul.addr %s129, 64
          %s131 = scalar_lea.hbm %s0, %s130
          %s133 = sshll.u32 %s125, 4
          %s134 = int_to_ptr.vmem [resolvable:$true] %s133
          %136 = dma.hbm_to_vmem [thread:$0]  %s131, 128, %s134, %s122
        $region24: #{tpu_custom_call.1} parent=19 // pred_fallthru
          _
      $region20: #{tpu_custom_call.1} parent=5 // pred_fallthru
        _
      %p137 = scmp.le.s32.totalorder 1, %s15
      %p138 = scmp.lt.s32.totalorder %s15, 3
      %p139 = pnand %p137, %p138
      %p140 = pneg %p139
      // Predicated region
      $region25: #{tpu_custom_call.1} parent=5 // pred_check
        _
      $region26: #{tpu_custom_call.1} parent=5 // pred_check_branch
        %142 = sbr.rel (%p139) target = $region28
      $region27: #{tpu_custom_call.1} parent=5 // pred_region
        %s143 = ssub.s32 %s15, 1
        %s144 = sand.u32 %s28, 1
        %s145 = scalar_lea.sflag [#allocation3], %s144
        %s146 = sand.u32 %s28, 1
        %s147 = smul.addr %s146, 8
        %s148 = scalar_lea.vmem [#allocation2], %s147
        // Predicated region
        $region29: #{tpu_custom_call.1} parent=27 // pred_check
          %p149 = pneg %p41
        $region30: #{tpu_custom_call.1} parent=27 // pred_check_branch
          %151 = sbr.rel (%p149) target = $region32
        $region31: #{tpu_custom_call.1} parent=27 // pred_region
          %152 = dma.done %s145, 128
        $region32: #{tpu_custom_call.1} parent=27 // pred_fallthru
          _
        // Predicated region
        $region33: #{tpu_custom_call.1} parent=27 // pred_check
          %p153 = pneg %p62
        $region34: #{tpu_custom_call.1} parent=27 // pred_check_branch
          %155 = sbr.rel (%p153) target = $region36
        $region35: #{tpu_custom_call.1} parent=27 // pred_region
          %156 = dma.done [#allocation6], 64
        $region36: #{tpu_custom_call.1} parent=27 // pred_fallthru
          _
        %s157 = sand.u32 %s28, 1
        %s158 = scalar_lea.sflag [#allocation3], %s157
        %s159 = sand.u32 %s28, 1
        %s160 = smul.addr %s159, 8
        %s161 = scalar_lea.vmem [#allocation2], %s160
        %p162 = pneg %p41
        %p163 = pneg %p38
        %p164 = pneg %p62
        %p165 = pneg %p59
        %p166 = pneg %p88
        %p167 = pneg %p85
        %s168 = sand.u32 %s75, 1
        %s169 = scalar_lea.sflag [#allocation4], %s168
        %s170 = sand.u32 %s75, 1
        %s171 = smul.addr %s170, 8
        %s172 = scalar_lea.vmem [#allocation7], %s171
        %v173 = vld [vmem:[%s148] sm:$0xff]
        %v174 = vld [vmem:[#allocation5] sm:$0xf]
        %v176 = vcombine.high %v173, %v173
        %vm178 = vcmask 1043456
        %v179 = vsel %vm178, %v173, 0.0
        %v180 = vsel %vm178, %v176, 0.0
        %v181 = vadd.f32 %v179, %v180
        %182 = vadd.xlane.f32.xlu0 %v181
        %v183 = vpop.xlane.xlu0 %182
        %v184 = vmul.f32 %v183, 0.00390625
        %v185 = vsel %vm178, %v183, 0.0
        %v186 = vrot.slane %v185, 4
        %v187 = vadd.f32 %v185, %v186
        %v188 = vrot.slane %v187, 2
        %v189 = vadd.f32 %v187, %v188
        %v190 = vrot.slane %v189, 1
        %v191 = vadd.f32 %v189, %v190
        %v192 = vmul.f32 %v191, 0.0009765625
        %v195 = vunpack.c.l.s4 839922192
        %v196 = vunpack.c.0.s8 %v195
        %v197 = vlaneseq
        %v198 = vshrl.u32 %v197, 7
        %v199 = vsub.s32 %v196, %v198
        %v200 = vrot.slane %v184, %v199
        %v202 = vsub.f32 %v173, %v200
        %v203 = vmul.f32 %v202, %v202
        %v205 = vcombine.high %v203, %v203
        %v207 = vsel %vm178, %v203, 0.0
        %v208 = vsel %vm178, %v205, 0.0
        %v209 = vadd.f32 %v207, %v208
        %210 = vadd.xlane.f32.xlu0 %v209
        %v211 = vpop.xlane.xlu0 %210
        %v212 = vmul.f32 %v211, 0.003921569
        %v213 = vadd.f32 %v212, 1e-06
        %v214 = vrsqrt.pop %v213
        %v215 = vsub.f32 %v184, %v192
        %v216 = vmul.f32 %v215, 256.0
        %v217 = vmul.f32 %v216, %v215
        %v218 = vadd.f32 %v211, %v217
        %v219 = vsel %vm178, %v218, 0.0
        %v220 = vrot.slane %v219, 4
        %v221 = vadd.f32 %v219, %v220
        %v222 = vrot.slane %v221, 2
        %v223 = vadd.f32 %v221, %v222
        %v224 = vrot.slane %v223, 1
        %v225 = vadd.f32 %v223, %v224
        %v226 = vmul.f32 %v225, 0.0009775171
        %v227 = vadd.f32 %v226, 1e-06
        %v228 = vrsqrt.pop %v227
        %v229 = vmul.f32 %v174, %v214
        %v230 = vmul.f32 %v174, %v228
        %232 = vrot.lane.b32.xlu0 %v230, 127
        %v233 = vpop.permute.xlu0 %232
        %v235 = vadd.f32 %v229, %v233
        %237 = vrot.lane.b32.xlu0 %v235, 126
        %v238 = vpop.permute.xlu0 %237
        %v240 = vmul.f32 %v174, %v238
        %v241 = vmul.f32 %v174, %v184
        %v242 = vmul.f32 %v241, %v214
        %v243 = vmul.f32 %v174, %v192
        %v244 = vmul.f32 %v243, %v228
        %246 = vrot.lane.b32.xlu0 %v244, 127
        %v247 = vpop.permute.xlu0 %246
        %v249 = vadd.f32 %v242, %v247
        %251 = vrot.lane.b32.xlu0 %v249, 126
        %v252 = vpop.permute.xlu0 %251
        %v254 = vmul.f32 %v174, %v252
        %256 = vrot.lane.b32.xlu0 %v254, 1
        %v257 = vpop.permute.xlu0 %256
        %v259 = vsub.f32 %v174, %v257
        %261 = vset.pattern.permute.xlu0 0
        %262 = vperm.xlu0 %261, %v240
        %v263 = vpop.permute.xlu0 %262
        %v265 = vunpack.c.l.s4 839922192
        %v266 = vunpack.c.0.s8 %v265
        %v267 = vlaneseq
        %v268 = vshrl.u32 %v267, 7
        %v269 = vsub.s32 %v266, %v268
        %v270 = vrot.slane %v263, %v269
        %v272 = vmul.f32 %v173, %v270
        %274 = vset.pattern.permute.xlu0 1
        %275 = vperm.xlu0 %274, %v259
        %v276 = vpop.permute.xlu0 %275
        %v278 = vunpack.c.l.s4 839922192
        %v279 = vunpack.c.0.s8 %v278
        %v280 = vlaneseq
        %v281 = vshrl.u32 %v280, 7
        %v282 = vsub.s32 %v279, %v281
        %v283 = vrot.slane %v276, %v282
        %v285 = vadd.f32 %v272, %v283
        %286 = vst [vmem:[%s172] sm:$0xff] %v285
        %s287 = sand.u32 %s75, 1
        %s288 = scalar_lea.sflag [#allocation4], %s287
        %s289 = sand.u32 %s75, 1
        %s290 = smul.addr %s289, 8
        %s291 = scalar_lea.vmem [#allocation7], %s290
        // Predicated region
        $region37: #{tpu_custom_call.1} parent=27 // pred_check
          %p292 = pneg %p85
        $region38: #{tpu_custom_call.1} parent=27 // pred_check_branch
          %294 = sbr.rel (%p292) target = $region40
        $region39: #{tpu_custom_call.1} parent=27 // pred_region
          %s296 = ssub.s32 128, 128
          %297 = vsyncadd %s288, %s296
          %s298 = smul.addr %s20, 2
          %s299 = smul.addr %s298, 64
          %s300 = scalar_lea.hbm %s2, %s299
          %s302 = sshll.u32 %s291, 4
          %s303 = int_to_ptr.vmem [resolvable:$true] %s302
          %305 = dma.vmem_to_hbm [thread:$0]  %s303, 128, %s300, %s288
        $region40: #{tpu_custom_call.1} parent=27 // pred_fallthru
          _
      $region28: #{tpu_custom_call.1} parent=5 // pred_fallthru
        _
      %p306 = scmp.le.s32.totalorder 2, %s15
      // Predicated region
      $region41: #{tpu_custom_call.1} parent=5 // pred_check
        %p307 = pneg %p306
      $region42: #{tpu_custom_call.1} parent=5 // pred_check_branch
        %309 = sbr.rel (%p307) target = $region44
      $region43: #{tpu_custom_call.1} parent=5 // pred_region
        %s310 = ssub.s32 %s15, 2
        // Predicated region
        $region45: #{tpu_custom_call.1} parent=43 // pred_check
          %p311 = pneg %p91
        $region46: #{tpu_custom_call.1} parent=43 // pred_check_branch
          %313 = sbr.rel (%p311) target = $region48
        $region47: #{tpu_custom_call.1} parent=43 // pred_region
          %s314 = sand.u32 %s76, 1
          %s315 = scalar_lea.sflag [#allocation4], %s314
          %s316 = sand.u32 %s76, 1
          %s317 = smul.addr %s316, 8
          %s318 = scalar_lea.vmem [#allocation7], %s317
          %319 = dma.done %s315, 128
        $region48: #{tpu_custom_call.1} parent=43 // pred_fallthru
          _
      $region44: #{tpu_custom_call.1} parent=5 // pred_fallthru
        _
    $region6: #{tpu_custom_call.1} parent=1 // loop_footer
      %s19 = sadd.s32 1, %s15
    $region7: #{tpu_custom_call.1} parent=1 // loop_footer_branch
      %14 = sbr.rel target = $region3
    $region8: #{tpu_custom_call.1} parent=1 // loop_exit
      _
    %320 = vsyncpa [#allocation3], 1
    %s321 = scalar_lea.sflag [#allocation3], 1
    %322 = vsyncpa %s321, 1
    %323 = vsyncpa [#allocation6], 1
    %324 = vsyncpa [#allocation4], 1
    %s325 = scalar_lea.sflag [#allocation4], 1
    %326 = vsyncpa %s325, 1

</llo_original>
